<compile_context>
chip_gen: v5e
topology: v5e:2x2
jax: 0.10.0
libtpu: 0.0.40
codegen_flags: <defaults>
</compile_context>

<pallas_src>
import jax
import jax.numpy as jnp
from jax import lax
from jax.experimental import pallas as pl
from jax.experimental.pallas import tpu as pltpu


def _make_attention_kernel(seq_len, s_tile, needs_s_mask):
    """Build the online-softmax attention-pooling kernel (closes over static S info)."""

    def kernel(x_ref, a_ref, o_ref, m_sc, l_sc, acc_sc):
        # x_ref : (b_tile, s_tile, H)   current (batch, sequence) tile of x
        # a_ref : (1, H)                attention vector, lane-dense
        # o_ref : (b_tile, H)           pooled output (resident across the S axis)
        # m_sc  : (b_tile, 1) f32       running max
        # l_sc  : (b_tile, 1) f32       running softmax denominator
        # acc_sc: (b_tile, H) f32       running weighted sum
        s_idx = pl.program_id(1)
        n_s = pl.num_programs(1)

        @pl.when(s_idx == 0)
        def _():
            m_sc[...] = jnp.full_like(m_sc, -jnp.inf)
            l_sc[...] = jnp.zeros_like(l_sc)
            acc_sc[...] = jnp.zeros_like(acc_sc)

        x = x_ref[...].astype(jnp.float32)          # (bt, st, H)
        a = a_ref[...].astype(jnp.float32)          # (1, H)
        bt, st, _ = x.shape

        if needs_s_mask:
            # Ragged S tail: zero padded rows of x and push their scores to -inf
            # so they contribute no exp() mass and no garbage to the accumulator.
            pos = s_idx * s_tile + lax.broadcasted_iota(jnp.int32, (bt, st), 1)
            valid = pos < seq_len
            x = jnp.where(valid[:, :, None], x, 0.0)

        # Attention scores on the VPU/XLU (avoid the N=1 MXU matmul):
        # (bt, st, H) * (1, 1, H) -> lane reduce over H -> (bt, st)
        scores = jnp.sum(x * a[None, :, :], axis=-1)
        if needs_s_mask:
            scores = jnp.where(valid, scores, -jnp.inf)

        # --- online softmax update over this S chunk ---
        m_prev = m_sc[...]                                           # (bt, 1)
        m_new = jnp.maximum(m_prev, jnp.max(scores, axis=-1, keepdims=True))
        alpha = jnp.exp(m_prev - m_new)                              # (bt, 1), EUP
        p = jnp.exp(scores - m_new)                                  # (bt, st), EUP

        l_sc[...] = alpha * l_sc[...] + jnp.sum(p, axis=-1, keepdims=True)
        acc_sc[...] = alpha * acc_sc[...] + jnp.sum(x * p[:, :, None], axis=1)
        m_sc[...] = m_new

        @pl.when(s_idx == n_s - 1)
        def _():
            l = l_sc[...]
            inv_l = pl.reciprocal(l, approx=True)        # EUP vrcp (free slot)
            inv_l = inv_l * (2.0 - l * inv_l)            # one Newton step -> f32 accurate
            o_ref[...] = (acc_sc[...] * inv_l).astype(o_ref.dtype)

    return kernel


def attention_forward(x, attention_param, *, b_tile=None, s_tile=None):
    """Pallas forward pass: x (B, S, H), attention_param (H, 1) -> (B, H)."""
    B, S, H = x.shape
    assert attention_param.shape == (H, 1)
    assert S > 1, "S == 1 changes the PyTorch implicit-dim softmax semantics"

    # --- tile selection (lane/sublane friendly, VMEM-safe on v5e/v6e/v7x) ---
    if b_tile is None:
        b_tile = B if B <= 8 else 8                       # sublane dim of the output block
    if s_tile is None:
        # Keep each (b_tile, s_tile, H) x block around <=2 MiB so the pipeline's
        # double buffers + in-kernel temporaries stay well inside the 32 MiB
        # default scoped VMEM (and v7x's smaller 64 MiB physical VMEM).
        target_bytes = 2 * 1024 * 1024
        cand = max(8, target_bytes // (b_tile * H * x.dtype.itemsize))
        s_tile = S if cand >= S else max(8, (cand // 8) * 8)
    # Block-shape validity: second-to-last dim of the x block must be a
    # multiple of 8 or equal the full S.
    assert s_tile == S or s_tile % 8 == 0
    assert b_tile == B or b_tile % 8 == 0

    a2 = attention_param.reshape(1, H)                    # lane-dense weight vector

    grid = (pl.cdiv(B, b_tile), pl.cdiv(S, s_tile))
    needs_s_mask = (S % s_tile) != 0

    kernel = _make_attention_kernel(S, s_tile, needs_s_mask)

    return pl.pallas_call(
        kernel,
        out_shape=jax.ShapeDtypeStruct((B, H), x.dtype),
        grid_spec=pltpu.PrefetchScalarGridSpec(
            num_scalar_prefetch=0,
            grid=grid,
            in_specs=[
                pl.BlockSpec((b_tile, s_tile, H), lambda b, s: (b, s, 0)),
                pl.BlockSpec((1, H), lambda b, s: (0, 0)),
            ],
            # Output block constant along the S axis -> accumulator pattern,
            # written back to HBM once per batch tile.
            out_specs=pl.BlockSpec((b_tile, H), lambda b, s: (b, 0)),
            scratch_shapes=[
                pltpu.VMEM((b_tile, 1), jnp.float32),   # running max
                pltpu.VMEM((b_tile, 1), jnp.float32),   # running denominator
                pltpu.VMEM((b_tile, H), jnp.float32),   # weighted-sum accumulator
            ],
        ),
        compiler_params=pltpu.CompilerParams(
            dimension_semantics=("parallel", "arbitrary"),
        ),
    )(x, a2)


def xavier_normal(key, shape):
    # torch.nn.init.xavier_normal_ for a 2-D tensor of shape (H, 1):
    # fan_in = 1, fan_out = H -> std = sqrt(2 / (H + 1)).
    fan_out, fan_in = shape[0], shape[1]
    std = (2.0 / (fan_in + fan_out)) ** 0.5
    return std * jax.random.normal(key, shape, dtype=jnp.float32)


def reference_forward(x, a):
    # Pure-JAX reference mirroring the PyTorch forward (B>1, S>1 case).
    scores = jnp.squeeze(jnp.matmul(x, a), axis=-1)          # (B, S)
    w = jax.nn.softmax(scores, axis=1)                       # softmax over S
    return jnp.sum(x * w[:, :, None], axis=1)                # (B, H)


if __name__ == "__main__":
    key = jax.random.PRNGKey(0)
    kx, ka, kx2, ka2 = jax.random.split(key, 4)

    # --- small shapes implied by the module: batch=2, seq=8, attention_size=32 ---
    B, S, H = 2, 8, 32
    x = jax.random.normal(kx, (B, S, H), dtype=jnp.float32)
    attention_param = xavier_normal(ka, (H, 1))

    out = attention_forward(x, attention_param)
    out = jax.block_until_ready(out)
    ref = reference_forward(x, attention_param)
    assert out.shape == (B, H)
    assert jnp.allclose(out, ref, atol=1e-5, rtol=1e-5), "mismatch vs reference (small)"

    # --- second run exercising the tiled/ragged path (ragged batch + ragged S tail) ---
    B2, S2, H2 = 10, 200, 128
    x2 = jax.random.normal(kx2, (B2, S2, H2), dtype=jnp.float32)
    attention_param2 = xavier_normal(ka2, (H2, 1))

    out2 = attention_forward(x2, attention_param2, b_tile=8, s_tile=64)
    out2 = jax.block_until_ready(out2)
    ref2 = reference_forward(x2, attention_param2)
    assert out2.shape == (B2, H2)
    assert jnp.allclose(out2, ref2, atol=1e-4, rtol=1e-4), "mismatch vs reference (tiled)"

    print("KERNEL_OK")
</pallas_src>

<mosaic_0001>
module attributes {stable_mosaic.version = 11 : i64} {
  func.func @kernel(%arg0: i32, %arg1: i32, %arg2: memref<2x8x32xf32, #tpu.memory_space<vmem>>, %arg3: memref<1x32xf32, #tpu.memory_space<vmem>>, %arg4: memref<2x32xf32, #tpu.memory_space<vmem>>, %arg5: memref<2x1xf32, #tpu.memory_space<vmem>>, %arg6: memref<2x1xf32, #tpu.memory_space<vmem>>, %arg7: memref<2x32xf32, #tpu.memory_space<vmem>>) attributes {dimension_semantics = [#tpu.dimension_semantics<parallel>, #tpu.dimension_semantics<arbitrary>], iteration_bounds = array<i64: 1, 1>, scalar_prefetch = 0 : i64, scratch_operands = 3 : i64, tpu.core_type = #tpu.core_type<tc>, window_params = [{transform_indices = @transform_0, window_bounds = array<i64: 2, 8, 32>}, {pipeline_mode = #tpu.pipeline_mode<synchronous>, transform_indices = @transform_1, window_bounds = array<i64: 1, 32>}, {transform_indices = @transform_2, window_bounds = array<i64: 2, 32>}]} {
    %c0_i32 = arith.constant 0 : i32
    %0 = arith.cmpi eq, %arg1, %c0_i32 : i32
    %1 = arith.extui %0 : i1 to i32
    %c0_i32_0 = arith.constant 0 : i32
    %2 = arith.cmpi ne, %1, %c0_i32_0 : i32
    scf.if %2 {
      %cst_22 = arith.constant 0xFF800000 : f32
      %37 = vector.broadcast %cst_22 : f32 to vector<2x1xf32>
      %c0_23 = arith.constant 0 : index
      %c0_24 = arith.constant 0 : index
      %38 = vector.load %arg5[%c0_23, %c0_24] : memref<2x1xf32, #tpu.memory_space<vmem>>, vector<2x1xf32>
      tpu.vector_store %arg5[%c0_23, %c0_24], %37 {strides = array<i32>} : memref<2x1xf32, #tpu.memory_space<vmem>>, vector<2x1xf32>,
      %cst_25 = arith.constant 0.000000e+00 : f32
      %39 = vector.broadcast %cst_25 : f32 to vector<2x1xf32>
      %c0_26 = arith.constant 0 : index
      %c0_27 = arith.constant 0 : index
      %40 = vector.load %arg6[%c0_26, %c0_27] : memref<2x1xf32, #tpu.memory_space<vmem>>, vector<2x1xf32>
      tpu.vector_store %arg6[%c0_26, %c0_27], %39 {strides = array<i32>} : memref<2x1xf32, #tpu.memory_space<vmem>>, vector<2x1xf32>,
      %cst_28 = arith.constant 0.000000e+00 : f32
      %41 = vector.broadcast %cst_28 : f32 to vector<2x32xf32>
      %c0_29 = arith.constant 0 : index
      %c0_30 = arith.constant 0 : index
      %42 = vector.load %arg7[%c0_29, %c0_30] : memref<2x32xf32, #tpu.memory_space<vmem>>, vector<2x32xf32>
      tpu.vector_store %arg7[%c0_29, %c0_30], %41 {strides = array<i32>} : memref<2x32xf32, #tpu.memory_space<vmem>>, vector<2x32xf32>,
    } else {
    }
    %c0 = arith.constant 0 : index
    %c0_1 = arith.constant 0 : index
    %c0_2 = arith.constant 0 : index
    %3 = vector.load %arg2[%c0, %c0_1, %c0_2] : memref<2x8x32xf32, #tpu.memory_space<vmem>>, vector<2x8x32xf32>
    %c0_3 = arith.constant 0 : index
    %c0_4 = arith.constant 0 : index
    %4 = vector.load %arg3[%c0_3, %c0_4] : memref<1x32xf32, #tpu.memory_space<vmem>>, vector<1x32xf32>
    %5 = vector.shape_cast %4 : vector<1x32xf32> to vector<1x1x32xf32>
    %6 = vector.broadcast %5 : vector<1x1x32xf32> to vector<2x8x32xf32>
    %7 = arith.mulf %3, %6 : vector<2x8x32xf32>
    %cst = arith.constant dense<0.000000e+00> : vector<2x8xf32>
    %8 = vector.multi_reduction <add>, %7, %cst [2] : vector<2x8x32xf32> to vector<2x8xf32>
    %c0_5 = arith.constant 0 : index
    %c0_6 = arith.constant 0 : index
    %9 = vector.load %arg5[%c0_5, %c0_6] : memref<2x1xf32, #tpu.memory_space<vmem>>, vector<2x1xf32>
    %cst_7 = arith.constant dense<0xFF800000> : vector<2xf32>
    %10 = vector.multi_reduction <maximumf>, %8, %cst_7 [1] : vector<2x8xf32> to vector<2xf32>
    %11 = vector.shape_cast %10 : vector<2xf32> to vector<2x1xf32>
    %12 = arith.maximumf %9, %11 : vector<2x1xf32>
    %13 = arith.subf %9, %12 : vector<2x1xf32>
    %14 = math.exp %13 : vector<2x1xf32>
    %15 = vector.broadcast %12 : vector<2x1xf32> to vector<2x8xf32>
    %16 = arith.subf %8, %15 : vector<2x8xf32>
    %17 = math.exp %16 : vector<2x8xf32>
    %c0_8 = arith.constant 0 : index
    %c0_9 = arith.constant 0 : index
    %18 = vector.load %arg6[%c0_8, %c0_9] : memref<2x1xf32, #tpu.memory_space<vmem>>, vector<2x1xf32>
    %19 = arith.mulf %14, %18 : vector<2x1xf32>
    %cst_10 = arith.constant dense<0.000000e+00> : vector<2xf32>
    %20 = vector.multi_reduction <add>, %17, %cst_10 [1] : vector<2x8xf32> to vector<2xf32>
    %21 = vector.shape_cast %20 : vector<2xf32> to vector<2x1xf32>
    %22 = arith.addf %19, %21 : vector<2x1xf32>
    %c0_11 = arith.constant 0 : index
    %c0_12 = arith.constant 0 : index
    %23 = vector.load %arg6[%c0_11, %c0_12] : memref<2x1xf32, #tpu.memory_space<vmem>>, vector<2x1xf32>
    tpu.vector_store %arg6[%c0_11, %c0_12], %22 {strides = array<i32>} : memref<2x1xf32, #tpu.memory_space<vmem>>, vector<2x1xf32>,
    %c0_13 = arith.constant 0 : index
    %c0_14 = arith.constant 0 : index
    %24 = vector.load %arg7[%c0_13, %c0_14] : memref<2x32xf32, #tpu.memory_space<vmem>>, vector<2x32xf32>
    %25 = vector.broadcast %14 : vector<2x1xf32> to vector<2x32xf32>
    %26 = arith.mulf %25, %24 : vector<2x32xf32>
    %27 = vector.shape_cast %17 : vector<2x8xf32> to vector<2x8x1xf32>
    %28 = vector.broadcast %27 : vector<2x8x1xf32> to vector<2x8x32xf32>
    %29 = arith.mulf %3, %28 : vector<2x8x32xf32>
    %cst_15 = arith.constant dense<0.000000e+00> : vector<2x32xf32>
    %30 = vector.multi_reduction <add>, %29, %cst_15 [1] : vector<2x8x32xf32> to vector<2x32xf32>
    %31 = arith.addf %26, %30 : vector<2x32xf32>
    %c0_16 = arith.constant 0 : index
    %c0_17 = arith.constant 0 : index
    %32 = vector.load %arg7[%c0_16, %c0_17] : memref<2x32xf32, #tpu.memory_space<vmem>>, vector<2x32xf32>
    tpu.vector_store %arg7[%c0_16, %c0_17], %31 {strides = array<i32>} : memref<2x32xf32, #tpu.memory_space<vmem>>, vector<2x32xf32>,
    %c0_18 = arith.constant 0 : index
    %c0_19 = arith.constant 0 : index
    %33 = vector.load %arg5[%c0_18, %c0_19] : memref<2x1xf32, #tpu.memory_space<vmem>>, vector<2x1xf32>
    tpu.vector_store %arg5[%c0_18, %c0_19], %12 {strides = array<i32>} : memref<2x1xf32, #tpu.memory_space<vmem>>, vector<2x1xf32>,
    %c0_i32_20 = arith.constant 0 : i32
    %34 = arith.cmpi eq, %arg1, %c0_i32_20 : i32
    %35 = arith.extui %34 : i1 to i32
    %c0_i32_21 = arith.constant 0 : i32
    %36 = arith.cmpi ne, %35, %c0_i32_21 : i32
    scf.if %36 {
      %c0_22 = arith.constant 0 : index
      %c0_23 = arith.constant 0 : index
      %37 = vector.load %arg6[%c0_22, %c0_23] : memref<2x1xf32, #tpu.memory_space<vmem>>, vector<2x1xf32>
      %38 = tpu.reciprocal %37 {approx = true} : vector<2x1xf32> -> vector<2x1xf32>
      %39 = arith.mulf %37, %38 : vector<2x1xf32>
      %cst_24 = arith.constant 2.000000e+00 : f32
      %40 = vector.broadcast %cst_24 : f32 to vector<2x1xf32>
      %41 = arith.subf %40, %39 : vector<2x1xf32>
      %42 = arith.mulf %38, %41 : vector<2x1xf32>
      %c0_25 = arith.constant 0 : index
      %c0_26 = arith.constant 0 : index
      %43 = vector.load %arg7[%c0_25, %c0_26] : memref<2x32xf32, #tpu.memory_space<vmem>>, vector<2x32xf32>
      %44 = vector.broadcast %42 : vector<2x1xf32> to vector<2x32xf32>
      %45 = arith.mulf %43, %44 : vector<2x32xf32>
      %c0_27 = arith.constant 0 : index
      %c0_28 = arith.constant 0 : index
      %46 = vector.load %arg4[%c0_27, %c0_28] : memref<2x32xf32, #tpu.memory_space<vmem>>, vector<2x32xf32>
      tpu.vector_store %arg4[%c0_27, %c0_28], %45 {strides = array<i32>} : memref<2x32xf32, #tpu.memory_space<vmem>>, vector<2x32xf32>,
    } else {
    }
    return
  }
  func.func @transform_0(%arg0: i32, %arg1: i32) -> (i32, i32, i32) {
    %c0_i32 = arith.constant 0 : i32
    %c0_i32_0 = arith.constant 0 : i32
    return %arg0, %arg1, %c0_i32 : i32, i32, i32
  }
  func.func @transform_1(%arg0: i32, %arg1: i32) -> (i32, i32) {
    %c0_i32 = arith.constant 0 : i32
    %c0_i32_0 = arith.constant 0 : i32
    %c0_i32_1 = arith.constant 0 : i32
    return %c0_i32, %c0_i32_0 : i32, i32
  }
  func.func @transform_2(%arg0: i32, %arg1: i32) -> (i32, i32) {
    %c0_i32 = arith.constant 0 : i32
    %c0_i32_0 = arith.constant 0 : i32
    return %arg0, %c0_i32 : i32, i32
  }
}

</mosaic_0001>

<llo_original>
// kernel: tpu_custom_call.1
$region0: #{tpu_custom_call.1}
  #allocation0 [shape = 'u32[]', space=smem, size = 0x4, offset = 0x4, fixed_abs, tag = 'smem constant byte address 0x4 - core index']
  #allocation1 [shape = 'u32[72,128]{1,0:T(1,128)}', space=vmem, size = 0x9000, scoped, tag = 'internal scratch']
  #allocation2 [shape = 'f32[2,1]{1,0:T(2,128)}', space=vmem, size = 0x400, scoped, tag = 'scratch operand']
  #allocation3 [shape = 'f32[2,1]{1,0:T(2,128)}', space=vmem, size = 0x400, scoped, tag = 'scratch operand']
  #allocation4 [shape = 'f32[2,32]{1,0:T(2,128)}', space=vmem, size = 0x400, scoped, tag = 'scratch operand']
  %s0 = inlined_call_operand.hbm [shape: f32[2,8,32], index: 0, kind: input, shape index: {}]
  %s1 = inlined_call_operand.hbm [shape: f32[1,32], index: 1, kind: input, shape index: {}]
  %s2 = inlined_call_operand.hbm [shape: f32[2,32], index: 2, kind: output, shape index: {}]
  %s3 = sld [smem:[#allocation0]]
  $region34: #{tpu_custom_call.1} parent=0
    _
  %s5 = ssub.s32 1, %s3
  %s6 = scalar_select 0, %s5, %s3
  $region1: #{tpu_custom_call.1} parent=0
    #allocation5 [shape = 'u8[8192]{0}', space=vmem, size = 0x2000, scoped, tag = 'input window, operand 0, single buffered']
    #allocation6 [shape = 's32[1]{0}', space=sflag, size = 0x4, scoped, tag = 'scoped memory for tpu_custom_call.1']
    #allocation7 [shape = 's32[1]{0}', space=sflag, size = 0x4, scoped, tag = 'scoped memory for tpu_custom_call.1']
    #allocation8 [shape = 'u8[512]{0}', space=vmem, size = 0x400, scoped, tag = 'input window, operand 1, single buffered']
    #allocation9 [shape = 's32[1]{0}', space=sflag, size = 0x4, scoped, tag = 'scoped memory for tpu_custom_call.1']
    #allocation10 [shape = 'u8[1024]{0}', space=vmem, size = 0x400, scoped, tag = 'output window, operand 0, single buffered']
    %7 = vsyncpa [#allocation6], 0
    %8 = vsyncpa [#allocation9], 0
    %9 = vsyncpa [#allocation7], 0
    // Predicated region
    $region2: #{tpu_custom_call.1} parent=1 // pred_check
      _
    $region3: #{tpu_custom_call.1} parent=1 // pred_check_branch
      %11 = sbr.rel (0) target = $region5
    $region4: #{tpu_custom_call.1} parent=1 // pred_region
      %13 = vsyncadd [#allocation6], 0
      %s14 = sshll.u32 %s0, 4
      %s15 = int_to_ptr.hbm [resolvable:$true] %s14
      %s16 = sshll.u32 [#allocation5], 4
      %s17 = int_to_ptr.vmem [resolvable:$true] %s16
      %22 = dma.hbm_to_vmem [thread:$0]  %s15, 256, %s17, [#allocation6], 128, 128, 8
    $region5: #{tpu_custom_call.1} parent=1 // pred_fallthru
      _
    // Predicated region
    $region6: #{tpu_custom_call.1} parent=1 // pred_check
      _
    $region7: #{tpu_custom_call.1} parent=1 // pred_check_branch
      %24 = sbr.rel (0) target = $region9
    $region8: #{tpu_custom_call.1} parent=1 // pred_region
      %26 = vsyncadd [#allocation9], 0
      %s28 = sshll.u32 %s1, 4
      %s29 = int_to_ptr.hbm [resolvable:$true] %s28
      %s30 = sshll.u32 [#allocation8], 4
      %s31 = int_to_ptr.vmem [resolvable:$true] %s30
      %33 = dma.hbm_to_vmem [thread:$0]  %s29, 16, %s31, [#allocation9]
    $region9: #{tpu_custom_call.1} parent=1 // pred_fallthru
      _
    // Predicated region
    $region10: #{tpu_custom_call.1} parent=1 // pred_check
      _
    $region11: #{tpu_custom_call.1} parent=1 // pred_check_branch
      %35 = sbr.rel (0) target = $region13
    $region12: #{tpu_custom_call.1} parent=1 // pred_region
      %37 = dma.done [#allocation6], 256
    $region13: #{tpu_custom_call.1} parent=1 // pred_fallthru
      _
    // Predicated region
    $region14: #{tpu_custom_call.1} parent=1 // pred_check
      _
    $region15: #{tpu_custom_call.1} parent=1 // pred_check_branch
      %39 = sbr.rel (0) target = $region17
    $region16: #{tpu_custom_call.1} parent=1 // pred_region
      %41 = dma.done [#allocation9], 16
    $region17: #{tpu_custom_call.1} parent=1 // pred_fallthru
      _
    %p42 = scmp.eq.s32.totalorder 0, 0
    // Predicated region
    $region18: #{tpu_custom_call.1} parent=1 // pred_check
      %p43 = pneg %p42
    $region19: #{tpu_custom_call.1} parent=1 // pred_check_branch
      %45 = sbr.rel (%p43) target = $region21
    $region20: #{tpu_custom_call.1} parent=1 // pred_region
      %vm46 = vcmask 1024
      %47 = vst.msk [vmem:[#allocation2] sm:$0x3] %vm46, -inf
      %48 = vst.msk [vmem:[#allocation3] sm:$0x3] %vm46, 0.0
      %vm49 = vcmask 254976
      %50 = vst.msk [vmem:[#allocation4] sm:$0x3] %vm49, 0.0
    $region21: #{tpu_custom_call.1} parent=1 // pred_fallthru
      _
    %v51 = vld [vmem:[#allocation5] sm:$0xff]
    %v52 = vld [vmem:[#allocation5 + $0x8] sm:$0xff]
    %v53 = vld [vmem:[#allocation8] sm:$0x1]
    %v55 = vperm.slane %v53, 0
    %v57 = vmul.f32 %v51, %v55
    %v58 = vmul.f32 %v52, %v55
    %vm59 = vcmask 261120
    %v60 = vsel %vm59, %v57, 0.0
    %61 = vadd.xlane.f32.xlu0 %v60
    %v62 = vpop.xlane.xlu0 %61
    %v63 = vsel %vm59, %v58, 0.0
    %64 = vadd.xlane.f32.xlu0 %v63
    %v65 = vpop.xlane.xlu0 %64
    %v66 = vld [vmem:[#allocation2] sm:$0x3]
    %v69 = vlaneseq
    %v70 = vand.u32 %v69, 127
    %v71 = vperm.slane %v62, %v70
    %v72 = vperm.slane %v65, %v70
    %vm73 = vcmask 1041409
    %v74 = vsel %vm73, %v72, %v71
    %vm76 = vcmask 58368
    %v77 = vsel %vm76, %v74, -inf
    %78 = vmax.xlane.f32.xlu0 %v77
    %v79 = vpop.xlane.xlu0 %78
    %v80 = vmax.f32 %v66, %v79
    %v81 = vsub.f32 %v66, %v80
    %v82 = vmul.f32 %v81, 1.442695
    %v83 = vpow.pop %v82
    %85 = vset.pattern.permute.xlu0 0
    %86 = vperm.xlu0 %85, %v80
    %v87 = vpop.permute.xlu0 %86
    %v88 = vperm.slane %v87, 0
    %v89 = vperm.slane %v87, 1
    %v92 = vsub.f32 %v62, %v88
    %v93 = vsub.f32 %v65, %v89
    %v94 = vmul.f32 %v92, 1.442695
    %v95 = vpow.pop %v94
    %v96 = vmul.f32 %v93, 1.442695
    %v97 = vpow.pop %v96
    %v98 = vld [vmem:[#allocation3] sm:$0x3]
    %v99 = vmul.f32 %v83, %v98
    %102 = vset.pattern.permute.xlu0 0
    %103 = vperm.xlu0 %102, %v95
    %v104 = vpop.permute.xlu0 %103
    %105 = vset.pattern.permute.xlu0 0
    %106 = vperm.xlu0 %105, %v97
    %v107 = vpop.permute.xlu0 %106
    %v108 = vperm.slane %v104, %v70
    %v109 = vperm.slane %v107, %v70
    %v110 = vsel %vm73, %v109, %v108
    %v112 = vsel %vm76, %v110, 0.0
    %113 = vadd.xlane.f32.xlu0 %v112
    %v114 = vpop.xlane.xlu0 %113
    %v115 = vadd.f32 %v99, %v114
    %vm116 = vcmask 1024
    %117 = vst.msk [vmem:[#allocation3] sm:$0x3] %vm116, %v115
    %v118 = vld [vmem:[#allocation4] sm:$0x3]
    %120 = vset.pattern.permute.xlu0 0
    %121 = vperm.xlu0 %120, %v83
    %v122 = vpop.permute.xlu0 %121
    %v124 = vmul.f32 %v122, %v118
    %v127 = vmul.f32 %v51, %v104
    %v128 = vmul.f32 %v52, %v107
    %v129 = vsel %vm59, %v127, 0.0
    %v130 = vrot.slane %v129, 4
    %v131 = vadd.f32 %v129, %v130
    %v132 = vrot.slane %v131, 2
    %v133 = vadd.f32 %v131, %v132
    %v134 = vrot.slane %v133, 1
    %v135 = vadd.f32 %v133, %v134
    %v136 = vsel %vm59, %v128, 0.0
    %v137 = vrot.slane %v136, 4
    %v138 = vadd.f32 %v136, %v137
    %v139 = vrot.slane %v138, 2
    %v140 = vadd.f32 %v138, %v139
    %v141 = vrot.slane %v140, 1
    %v142 = vadd.f32 %v140, %v141
    %v145 = vsel %vm73, %v142, %v135
    %v147 = vadd.f32 %v124, %v145
    %vm148 = vcmask 254976
    %149 = vst.msk [vmem:[#allocation4] sm:$0x3] %vm148, %v147
    %150 = vst.msk [vmem:[#allocation2] sm:$0x3] %vm116, %v80
    // Predicated region
    $region22: #{tpu_custom_call.1} parent=1 // pred_check
      %p151 = pneg %p42
    $region23: #{tpu_custom_call.1} parent=1 // pred_check_branch
      %153 = sbr.rel (%p151) target = $region25
    $region24: #{tpu_custom_call.1} parent=1 // pred_region
      %v154 = vld [vmem:[#allocation3] sm:$0x3]
      %v155 = vrcp.pop %v154
      %v156 = vmul.f32 %v154, %v155
      %v157 = vsub.f32 2.0, %v156
      %v158 = vmul.f32 %v155, %v157
      %v159 = vld [vmem:[#allocation4] sm:$0x3]
      %161 = vset.pattern.permute.xlu0 0
      %162 = vperm.xlu0 %161, %v158
      %v163 = vpop.permute.xlu0 %162
      %v165 = vmul.f32 %v159, %v163
      %166 = vst.msk [vmem:[#allocation10] sm:$0x3] %vm148, %v165
    $region25: #{tpu_custom_call.1} parent=1 // pred_fallthru
      _
    // Predicated region
    $region26: #{tpu_custom_call.1} parent=1 // pred_check
      _
    $region27: #{tpu_custom_call.1} parent=1 // pred_check_branch
      %168 = sbr.rel (0) target = $region29
    $region28: #{tpu_custom_call.1} parent=1 // pred_region
      %170 = vsyncadd [#allocation7], 0
      %s172 = sshll.u32 [#allocation10], 4
      %s173 = int_to_ptr.vmem [resolvable:$true] %s172
      %s174 = sshll.u32 %s2, 4
      %s175 = int_to_ptr.hbm [resolvable:$true] %s174
      %177 = dma.vmem_to_hbm [thread:$0]  %s173, 32, %s175, [#allocation7]
    $region29: #{tpu_custom_call.1} parent=1 // pred_fallthru
      _
    // Predicated region
    $region30: #{tpu_custom_call.1} parent=1 // pred_check
      _
    $region31: #{tpu_custom_call.1} parent=1 // pred_check_branch
      %179 = sbr.rel (0) target = $region33
    $region32: #{tpu_custom_call.1} parent=1 // pred_region
      %181 = dma.done [#allocation7], 32
    $region33: #{tpu_custom_call.1} parent=1 // pred_fallthru
      _
    %182 = vsyncpa [#allocation6], 1
    %183 = vsyncpa [#allocation9], 1
    %184 = vsyncpa [#allocation7], 1

</llo_original>
